<compile_context>
chip_gen: v7x
topology: tpu7x:2x2x1
jax: 0.10.0
libtpu: 0.0.40
codegen_flags: <defaults>
</compile_context>

<pallas_src>
import functools

import jax
import jax.numpy as jnp
from jax import lax
from jax.experimental import pallas as pl
from jax.experimental.pallas import tpu as pltpu


def _round_up(x: int, m: int) -> int:
    return ((x + m - 1) // m) * m


def _cdiv(a: int, b: int) -> int:
    return (a + b - 1) // b


def _ffn_kernel(x_ref, w1_ref, b1_ref, w2_ref, b2_ref, g_ref, beta_ref,
                o_ref, acc_ref, *, eps: float, sub: int, n_sub: int):
    """One (row-tile, ff-chunk) step. grid = (M_tiles, F_chunks); f is a reduction."""
    f = pl.program_id(1)
    nf = pl.num_programs(1)

    @pl.when(f == 0)
    def _():
        acc_ref[...] = jnp.zeros_like(acc_ref)

    x = x_ref[...]
    # Produce h directly in bf16 when weights are bf16 (halves the hidden
    # footprint and skips a full VPU cast pass); otherwise keep f32.
    h_dtype = jnp.bfloat16 if w2_ref.dtype == jnp.bfloat16 else jnp.float32

    def sub_step(k, carry):
        off = pl.multiple_of(k * sub, 128)
        w1_s = w1_ref[:, pl.ds(off, sub)]
        b1_s = b1_ref[:, pl.ds(off, sub)]
        w2_s = w2_ref[pl.ds(off, sub), :]
        # linear1 sub-slice + ReLU (dropout == identity at inference)
        h = jnp.dot(x, w1_s, preferred_element_type=h_dtype)
        h = jnp.maximum(h + b1_s.astype(h_dtype), 0.0)
        # linear2 sub-slice, accumulated in f32 (dropout2 == identity)
        acc_ref[...] += jnp.dot(h.astype(w2_s.dtype), w2_s,
                                preferred_element_type=jnp.float32)
        return carry

    if n_sub == 1:
        sub_step(0, 0)
    else:
        lax.fori_loop(0, n_sub, sub_step, 0, unroll=True)

    @pl.when(f == nf - 1)
    def _():
        # bias2 + residual + LayerNorm over d_model, all in f32.
        y = x.astype(jnp.float32) + acc_ref[...] + b2_ref[...].astype(jnp.float32)
        mean = jnp.mean(y, axis=-1, keepdims=True)
        cent = y - mean
        var = jnp.mean(cent * cent, axis=-1, keepdims=True)
        normed = cent * lax.rsqrt(var + eps)
        o_ref[...] = (normed * g_ref[...].astype(jnp.float32)
                      + beta_ref[...].astype(jnp.float32)).astype(o_ref.dtype)


def feed_forward(x, w1, b1, w2, b2, gamma, beta, *, eps=1e-5,
                 tm=512, tf=2048):
    """x: (batch, seq, d_model). Weights stored as (in, out). Returns x's shape/dtype.

    On v6e with very large M, passing tm=1024 further improves arithmetic
    intensity (weight re-streaming); defaults are safe on all generations.
    """
    batch, seq, d_model = x.shape
    ff_dim = w1.shape[1]
    M = batch * seq

    x_bytes = jnp.dtype(x.dtype).itemsize
    w_bytes = jnp.dtype(w1.dtype).itemsize

    # ---- physical VMEM (per-TensorCore) for budget-driven sizing ----------
    try:
        phys_vmem = int(pltpu.get_tpu_info().vmem_capacity_bytes)
    except Exception:
        phys_vmem = 64 * 1024 * 1024  # conservative (v7x-sized) fallback

    # ---- row-tile (tm) selection: 128-aligned, >=2 tiles for megacore ------
    sublane = 16 if x.dtype == jnp.bfloat16 else 8
    tm_req = max(128, (int(tm) // 128) * 128)
    if M <= 256:
        # Tiny problem: a single tile covering all rows (block == full dim).
        tm_eff = _round_up(M, sublane)
        M_pad = tm_eff
    else:
        # >= 2 row tiles so the "parallel" grid axis feeds both v7x
        # TensorCores; size tiles to minimise padding for awkward M.
        n_tiles = max(2, _cdiv(M, tm_req))
        tm_eff = _round_up(_cdiv(M, n_tiles), 128)
        M_pad = _round_up(M, tm_eff)

    # ---- ff-chunk (tf) selection from a per-generation VMEM budget ---------
    # Per grid step: W1 chunk (d_model, tf) + W2 chunk (tf, d_model), double
    # buffered -> 4 * d_model * tf * w_bytes bytes of streamed weights.
    weight_budget = (48 << 20) if phys_vmem >= (100 << 20) else (24 << 20)
    tf_budget = max(128, (weight_budget // (4 * d_model * w_bytes)) // 128 * 128)
    tf_eff = min(_round_up(tf, 128), tf_budget, _round_up(ff_dim, 128))
    F_pad = _round_up(ff_dim, tf_eff)

    # Inner sub-slice width: <=512, divides tf_eff (tf_eff is a 128-multiple).
    if tf_eff <= 512:
        sub = tf_eff
    else:
        sub = next(c for c in (512, 384, 256, 128) if tf_eff % c == 0)
    n_sub = tf_eff // sub

    # ---- padding (zero-padded ff columns contribute nothing: relu(0)@0 = 0;
    # zero-padded rows are sliced away before return) ------------------------
    x2 = x.reshape(M, d_model)
    if M_pad != M:
        x2 = jnp.pad(x2, ((0, M_pad - M), (0, 0)))
    if F_pad != ff_dim:
        w1 = jnp.pad(w1, ((0, 0), (0, F_pad - ff_dim)))
        b1 = jnp.pad(b1, (0, F_pad - ff_dim))
        w2 = jnp.pad(w2, ((0, F_pad - ff_dim), (0, 0)))

    b1r = b1.reshape(1, F_pad)
    b2r = b2.reshape(1, d_model)
    gr = gamma.reshape(1, d_model)
    br = beta.reshape(1, d_model)

    n_row_tiles = M_pad // tm_eff
    grid = (n_row_tiles, F_pad // tf_eff)
    kernel = functools.partial(_ffn_kernel, eps=eps, sub=sub, n_sub=n_sub)

    # ---- VMEM limit: actual tile footprint + headroom, capped below phys ---
    vmem_needed = (
        2 * tm_eff * d_model * x_bytes        # x tile, double buffered
        + 2 * tm_eff * d_model * x_bytes      # out tile, double buffered
        + 4 * d_model * tf_eff * w_bytes      # W1 + W2 chunks, double buffered
        + 4 * tf_eff * w_bytes                # b1 chunks (tiny)
        + 6 * d_model * w_bytes               # b2 / gamma / beta (tiny)
        + tm_eff * d_model * 4                # f32 accumulator scratch
        + tm_eff * sub * 4                    # live hidden sub-slice
    )
    vmem_limit = max(32 << 20, vmem_needed + (16 << 20))
    vmem_limit = min(vmem_limit, phys_vmem - (8 << 20))

    # ---- cost estimate (weights are re-streamed once per row tile) ---------
    cost = pl.CostEstimate(
        flops=4 * M_pad * d_model * F_pad,
        transcendentals=M_pad,
        bytes_accessed=(x_bytes * 2 * M_pad * d_model
                        + w_bytes * n_row_tiles * (2 * d_model * F_pad + F_pad)
                        + w_bytes * 3 * d_model),
    )

    out = pl.pallas_call(
        kernel,
        out_shape=jax.ShapeDtypeStruct((M_pad, d_model), x.dtype),
        grid_spec=pltpu.PrefetchScalarGridSpec(
            num_scalar_prefetch=0,
            grid=grid,
            in_specs=[
                pl.BlockSpec((tm_eff, d_model), lambda i, f: (i, 0)),   # x tile
                pl.BlockSpec((d_model, tf_eff), lambda i, f: (0, f)),   # W1 chunk
                pl.BlockSpec((1, tf_eff), lambda i, f: (0, f)),         # b1 chunk
                pl.BlockSpec((tf_eff, d_model), lambda i, f: (f, 0)),   # W2 chunk
                pl.BlockSpec((1, d_model), lambda i, f: (0, 0)),        # b2
                pl.BlockSpec((1, d_model), lambda i, f: (0, 0)),        # gamma
                pl.BlockSpec((1, d_model), lambda i, f: (0, 0)),        # beta
            ],
            out_specs=pl.BlockSpec((tm_eff, d_model), lambda i, f: (i, 0)),
            scratch_shapes=[pltpu.VMEM((tm_eff, d_model), jnp.float32)],
        ),
        compiler_params=pltpu.CompilerParams(
            dimension_semantics=("parallel", "arbitrary"),
            vmem_limit_bytes=int(vmem_limit)),
        cost_estimate=cost,
    )(x2, w1, b1r, w2, b2r, gr, br)

    return out[:M].reshape(batch, seq, d_model)


def feed_forward_ref(x, w1, b1, w2, b2, gamma, beta, eps=1e-5):
    h = jnp.maximum(x @ w1 + b1, 0.0)
    h = h @ w2 + b2
    y = x + h
    mean = jnp.mean(y, axis=-1, keepdims=True)
    var = jnp.mean((y - mean) ** 2, axis=-1, keepdims=True)
    return (y - mean) * lax.rsqrt(var + eps) * gamma + beta


if __name__ == "__main__":
    # Small shapes consistent with the module; d_model a multiple of 128 so the
    # output store is lane-dense.  tf=128 exercises the ff_dim reduction axis
    # (2 chunks) even at this small size.
    batch, seq, d_model, ff_dim = 2, 8, 128, 256

    key = jax.random.PRNGKey(0)
    kx, k1, k2, k3, k4 = jax.random.split(key, 5)

    x = jax.random.normal(kx, (batch, seq, d_model), dtype=jnp.float32)

    # Deterministic parameter init (roughly nn.Linear scale).
    lim1 = 1.0 / (d_model ** 0.5)
    lim2 = 1.0 / (ff_dim ** 0.5)
    w1 = jax.random.uniform(k1, (d_model, ff_dim), jnp.float32, -lim1, lim1)
    b1 = jax.random.uniform(k2, (ff_dim,), jnp.float32, -lim1, lim1)
    w2 = jax.random.uniform(k3, (ff_dim, d_model), jnp.float32, -lim2, lim2)
    b2 = jax.random.uniform(k4, (d_model,), jnp.float32, -lim2, lim2)
    gamma = jnp.ones((d_model,), jnp.float32)   # LayerNorm weight init
    beta = jnp.zeros((d_model,), jnp.float32)   # LayerNorm bias init

    out = feed_forward(x, w1, b1, w2, b2, gamma, beta, tf=128)
    out = jax.block_until_ready(out)

    ref = feed_forward_ref(x, w1, b1, w2, b2, gamma, beta)
    assert out.shape == (batch, seq, d_model)
    assert jnp.allclose(out, ref, atol=2e-5, rtol=2e-5), "mismatch vs reference"

    print("KERNEL_OK")
</pallas_src>

<mosaic_0001>
module attributes {stable_mosaic.version = 11 : i64} {
  func.func @_ffn_kernel(%arg0: i32, %arg1: i32, %arg2: memref<16x128xf32, #tpu.memory_space<vmem>>, %arg3: memref<128x128xf32, #tpu.memory_space<vmem>>, %arg4: memref<1x128xf32, #tpu.memory_space<vmem>>, %arg5: memref<128x128xf32, #tpu.memory_space<vmem>>, %arg6: memref<1x128xf32, #tpu.memory_space<vmem>>, %arg7: memref<1x128xf32, #tpu.memory_space<vmem>>, %arg8: memref<1x128xf32, #tpu.memory_space<vmem>>, %arg9: memref<16x128xf32, #tpu.memory_space<vmem>>, %arg10: memref<16x128xf32, #tpu.memory_space<vmem>>) attributes {dimension_semantics = [#tpu.dimension_semantics<parallel>, #tpu.dimension_semantics<arbitrary>], iteration_bounds = array<i64: 1, 2>, scalar_prefetch = 0 : i64, scratch_operands = 1 : i64, tpu.core_type = #tpu.core_type<tc>, window_params = [{transform_indices = @transform_0, window_bounds = array<i64: 16, 128>}, {transform_indices = @transform_1, window_bounds = array<i64: 128, 128>}, {transform_indices = @transform_2, window_bounds = array<i64: 1, 128>}, {transform_indices = @transform_3, window_bounds = array<i64: 128, 128>}, {pipeline_mode = #tpu.pipeline_mode<synchronous>, transform_indices = @transform_4, window_bounds = array<i64: 1, 128>}, {pipeline_mode = #tpu.pipeline_mode<synchronous>, transform_indices = @transform_5, window_bounds = array<i64: 1, 128>}, {pipeline_mode = #tpu.pipeline_mode<synchronous>, transform_indices = @transform_6, window_bounds = array<i64: 1, 128>}, {transform_indices = @transform_7, window_bounds = array<i64: 16, 128>}]} {
    %c0_i32 = arith.constant 0 : i32
    %0 = arith.cmpi eq, %arg1, %c0_i32 : i32
    %1 = arith.extui %0 : i1 to i32
    %c0_i32_0 = arith.constant 0 : i32
    %2 = arith.cmpi ne, %1, %c0_i32_0 : i32
    scf.if %2 {
      %cst_13 = arith.constant 0.000000e+00 : f32
      %23 = vector.broadcast %cst_13 : f32 to vector<16x128xf32>
      %c0_14 = arith.constant 0 : index
      %c0_15 = arith.constant 0 : index
      %24 = vector.load %arg10[%c0_14, %c0_15] : memref<16x128xf32, #tpu.memory_space<vmem>>, vector<16x128xf32>
      tpu.vector_store %arg10[%c0_14, %c0_15], %23 {strides = array<i32>} : memref<16x128xf32, #tpu.memory_space<vmem>>, vector<16x128xf32>,
    } else {
    }
    %c0 = arith.constant 0 : index
    %c0_1 = arith.constant 0 : index
    %3 = vector.load %arg2[%c0, %c0_1] : memref<16x128xf32, #tpu.memory_space<vmem>>, vector<16x128xf32>
    %c0_i32_2 = arith.constant 0 : i32
    %4 = tpu.assume_multiple %c0_i32_2, 128 : i32
    %c0_3 = arith.constant 0 : index
    %5 = arith.index_cast %4 : i32 to index
    %6 = vector.load %arg3[%c0_3, %5] : memref<128x128xf32, #tpu.memory_space<vmem>>, vector<128x128xf32>
    %c0_4 = arith.constant 0 : index
    %7 = arith.index_cast %4 : i32 to index
    %8 = vector.load %arg4[%c0_4, %7] : memref<1x128xf32, #tpu.memory_space<vmem>>, vector<1x128xf32>
    %9 = arith.index_cast %4 : i32 to index
    %c0_5 = arith.constant 0 : index
    %10 = vector.load %arg5[%9, %c0_5] : memref<128x128xf32, #tpu.memory_space<vmem>>, vector<128x128xf32>
    %cst = arith.constant dense<0.000000e+00> : vector<16x128xf32>
    %11 = tpu.matmul %3, %6, %cst {dimension_numbers = #tpu.dot_dimension_numbers<[1], [0], [0], [1], [0, 0, 1, 1], [], []>} : vector<16x128xf32>, vector<128x128xf32>, vector<16x128xf32> -> vector<16x128xf32>
    %12 = vector.broadcast %8 : vector<1x128xf32> to vector<16x128xf32>
    %13 = arith.addf %11, %12 : vector<16x128xf32>
    %cst_6 = arith.constant 0.000000e+00 : f32
    %14 = vector.broadcast %cst_6 : f32 to vector<16x128xf32>
    %15 = arith.maximumf %13, %14 : vector<16x128xf32>
    %c0_7 = arith.constant 0 : index
    %c0_8 = arith.constant 0 : index
    %16 = vector.load %arg10[%c0_7, %c0_8] : memref<16x128xf32, #tpu.memory_space<vmem>>, vector<16x128xf32>
    %cst_9 = arith.constant dense<0.000000e+00> : vector<16x128xf32>
    %17 = tpu.matmul %15, %10, %cst_9 {dimension_numbers = #tpu.dot_dimension_numbers<[1], [0], [0], [1], [0, 0, 1, 1], [], []>} : vector<16x128xf32>, vector<128x128xf32>, vector<16x128xf32> -> vector<16x128xf32>
    %18 = arith.addf %16, %17 : vector<16x128xf32>
    %c0_10 = arith.constant 0 : index
    %c0_11 = arith.constant 0 : index
    %19 = vector.load %arg10[%c0_10, %c0_11] : memref<16x128xf32, #tpu.memory_space<vmem>>, vector<16x128xf32>
    tpu.vector_store %arg10[%c0_10, %c0_11], %18 {strides = array<i32>} : memref<16x128xf32, #tpu.memory_space<vmem>>, vector<16x128xf32>,
    %c1_i32 = arith.constant 1 : i32
    %20 = arith.cmpi eq, %arg1, %c1_i32 : i32
    %21 = arith.extui %20 : i1 to i32
    %c0_i32_12 = arith.constant 0 : i32
    %22 = arith.cmpi ne, %21, %c0_i32_12 : i32
    scf.if %22 {
      %c0_13 = arith.constant 0 : index
      %c0_14 = arith.constant 0 : index
      %23 = vector.load %arg10[%c0_13, %c0_14] : memref<16x128xf32, #tpu.memory_space<vmem>>, vector<16x128xf32>
      %24 = arith.addf %3, %23 : vector<16x128xf32>
      %c0_15 = arith.constant 0 : index
      %c0_16 = arith.constant 0 : index
      %25 = vector.load %arg6[%c0_15, %c0_16] : memref<1x128xf32, #tpu.memory_space<vmem>>, vector<1x128xf32>
      %26 = vector.broadcast %25 : vector<1x128xf32> to vector<16x128xf32>
      %27 = arith.addf %24, %26 : vector<16x128xf32>
      %cst_17 = arith.constant dense<0.000000e+00> : vector<16xf32>
      %28 = vector.multi_reduction <add>, %27, %cst_17 [1] : vector<16x128xf32> to vector<16xf32>
      %29 = vector.shape_cast %28 : vector<16xf32> to vector<16x1xf32>
      %cst_18 = arith.constant 1.280000e+02 : f32
      %30 = vector.broadcast %cst_18 : f32 to vector<16x1xf32>
      %31 = arith.divf %29, %30 : vector<16x1xf32>
      %32 = vector.broadcast %31 : vector<16x1xf32> to vector<16x128xf32>
      %33 = arith.subf %27, %32 : vector<16x128xf32>
      %34 = arith.mulf %33, %33 : vector<16x128xf32>
      %cst_19 = arith.constant dense<0.000000e+00> : vector<16xf32>
      %35 = vector.multi_reduction <add>, %34, %cst_19 [1] : vector<16x128xf32> to vector<16xf32>
      %36 = vector.shape_cast %35 : vector<16xf32> to vector<16x1xf32>
      %cst_20 = arith.constant 1.280000e+02 : f32
      %37 = vector.broadcast %cst_20 : f32 to vector<16x1xf32>
      %38 = arith.divf %36, %37 : vector<16x1xf32>
      %cst_21 = arith.constant 9.99999974E-6 : f32
      %39 = vector.broadcast %cst_21 : f32 to vector<16x1xf32>
      %40 = arith.addf %38, %39 : vector<16x1xf32>
      %41 = math.rsqrt %40 : vector<16x1xf32>
      %42 = vector.broadcast %41 : vector<16x1xf32> to vector<16x128xf32>
      %43 = arith.mulf %33, %42 : vector<16x128xf32>
      %c0_22 = arith.constant 0 : index
      %c0_23 = arith.constant 0 : index
      %44 = vector.load %arg7[%c0_22, %c0_23] : memref<1x128xf32, #tpu.memory_space<vmem>>, vector<1x128xf32>
      %45 = vector.broadcast %44 : vector<1x128xf32> to vector<16x128xf32>
      %46 = arith.mulf %43, %45 : vector<16x128xf32>
      %c0_24 = arith.constant 0 : index
      %c0_25 = arith.constant 0 : index
      %47 = vector.load %arg8[%c0_24, %c0_25] : memref<1x128xf32, #tpu.memory_space<vmem>>, vector<1x128xf32>
      %48 = vector.broadcast %47 : vector<1x128xf32> to vector<16x128xf32>
      %49 = arith.addf %46, %48 : vector<16x128xf32>
      %c0_26 = arith.constant 0 : index
      %c0_27 = arith.constant 0 : index
      %50 = vector.load %arg9[%c0_26, %c0_27] : memref<16x128xf32, #tpu.memory_space<vmem>>, vector<16x128xf32>
      tpu.vector_store %arg9[%c0_26, %c0_27], %49 {strides = array<i32>} : memref<16x128xf32, #tpu.memory_space<vmem>>, vector<16x128xf32>,
    } else {
    }
    return
  }
  func.func @transform_0(%arg0: i32, %arg1: i32) -> (i32, i32) {
    %c0_i32 = arith.constant 0 : i32
    %c0_i32_0 = arith.constant 0 : i32
    return %arg0, %c0_i32 : i32, i32
  }
  func.func @transform_1(%arg0: i32, %arg1: i32) -> (i32, i32) {
    %c0_i32 = arith.constant 0 : i32
    %c0_i32_0 = arith.constant 0 : i32
    return %c0_i32, %arg1 : i32, i32
  }
  func.func @transform_2(%arg0: i32, %arg1: i32) -> (i32, i32) {
    %c0_i32 = arith.constant 0 : i32
    %c0_i32_0 = arith.constant 0 : i32
    return %c0_i32, %arg1 : i32, i32
  }
  func.func @transform_3(%arg0: i32, %arg1: i32) -> (i32, i32) {
    %c0_i32 = arith.constant 0 : i32
    %c0_i32_0 = arith.constant 0 : i32
    return %arg1, %c0_i32 : i32, i32
  }
  func.func @transform_4(%arg0: i32, %arg1: i32) -> (i32, i32) {
    %c0_i32 = arith.constant 0 : i32
    %c0_i32_0 = arith.constant 0 : i32
    %c0_i32_1 = arith.constant 0 : i32
    return %c0_i32, %c0_i32_0 : i32, i32
  }
  func.func @transform_5(%arg0: i32, %arg1: i32) -> (i32, i32) {
    %c0_i32 = arith.constant 0 : i32
    %c0_i32_0 = arith.constant 0 : i32
    %c0_i32_1 = arith.constant 0 : i32
    return %c0_i32, %c0_i32_0 : i32, i32
  }
  func.func @transform_6(%arg0: i32, %arg1: i32) -> (i32, i32) {
    %c0_i32 = arith.constant 0 : i32
    %c0_i32_0 = arith.constant 0 : i32
    %c0_i32_1 = arith.constant 0 : i32
    return %c0_i32, %c0_i32_0 : i32, i32
  }
  func.func @transform_7(%arg0: i32, %arg1: i32) -> (i32, i32) {
    %c0_i32 = arith.constant 0 : i32
    %c0_i32_0 = arith.constant 0 : i32
    return %arg0, %c0_i32 : i32, i32
  }
}

</mosaic_0001>

<llo_original>
// kernel: tpu_custom_call.1
$region0: #{tpu_custom_call.1}
  #allocation0 [shape = 'u32[]', space=smem, size = 0x4, offset = 0x4, fixed_abs, tag = 'smem constant byte address 0x4 - core index']
  #allocation1 [shape = 'u32[144,128]{1,0:T(1,128)}', space=vmem, size = 0x12000, scoped, tag = 'internal scratch']
  #allocation2 [shape = 'f32[16,128]{1,0:T(8,128)}', space=vmem, size = 0x2000, scoped, tag = 'scratch operand']
  %s0 = inlined_call_operand.hbm [shape: f32[16,128], index: 0, kind: input, shape index: {}]
  %s1 = inlined_call_operand.hbm [shape: f32[128,256], index: 1, kind: input, shape index: {}]
  %s2 = inlined_call_operand.vmem [shape: f32[1,256], index: 2, kind: input, shape index: {}]
  %s3 = inlined_call_operand.hbm [shape: f32[256,128], index: 3, kind: input, shape index: {}]
  %s4 = inlined_call_operand.vmem [shape: f32[1,128], index: 4, kind: input, shape index: {}]
  %s5 = inlined_call_operand.vmem [shape: f32[1,128], index: 5, kind: input, shape index: {}]
  %s6 = inlined_call_operand.vmem [shape: f32[1,128], index: 6, kind: input, shape index: {}]
  %s7 = inlined_call_operand.hbm [shape: f32[16,128], index: 7, kind: output, shape index: {}]
  %s8 = sld [smem:[#allocation0]]
  $region81: #{tpu_custom_call.1} parent=0
    _
  %s10 = ssub.s32 1, %s8
  %s11 = scalar_select 0, %s10, %s8
  $region1: #{tpu_custom_call.1} parent=0
    #allocation3 [shape = 'u8[8192]{0}', space=vmem, size = 0x2000, scoped, tag = 'input window, operand 0, single buffered']
    #allocation4 [shape = 's32[2]{0}', space=sflag, size = 0x8, scoped, tag = 'scoped memory for tpu_custom_call.1']
    #allocation5 [shape = 's32[2]{0}', space=sflag, size = 0x8, scoped, tag = 'scoped memory for tpu_custom_call.1']
    #allocation6 [shape = 'u8[131072]{0}', space=vmem, size = 0x20000, scoped, tag = 'input window, operand 1']
    #allocation7 [shape = 's32[2]{0}', space=sflag, size = 0x8, scoped, tag = 'scoped memory for tpu_custom_call.1']
    #allocation8 [shape = 'u8[131072]{0}', space=vmem, size = 0x20000, scoped, tag = 'input window, operand 3']
    #allocation9 [shape = 'u8[8192]{0}', space=vmem, size = 0x2000, scoped, tag = 'output window, operand 0, single buffered']
    %12 = vsyncpa [#allocation4], 0
    %13 = vsyncpa [#allocation7], 0
    %s14 = scalar_lea.sflag [#allocation7], 1
    %15 = vsyncpa %s14, 0
    %16 = vsyncpa [#allocation5], 0
    loop: start=0, step=1, limit=4
    $region2: #{tpu_custom_call.1} parent=1 // loop_pre_header
      _
    $region3: #{tpu_custom_call.1} parent=1 // loop_header
      %s18 = sphi 0, %s22
      %p19 = scmp.ge.s32.totalorder %s18, 4
      %s25 = sphi 0, %s37
      %s26 = sphi 0, %s33
      %s27 = sphi 0, %s25
      %s28 = sphi 0, %s26
      %s29 = sphi 0, %s27
      %s30 = sphi 0, %s28
      %s40 = sphi 0, %s42
      %s43 = sphi 0, %s40
      %s44 = sphi 0, %s43
      %s60 = sphi 0, %s44
      %s66 = sphi 0, %s68
      %s69 = sphi 0, %s66
      %s70 = sphi 0, %s69
      %s86 = sphi 0, %s70
      %s92 = sphi 0, %s94
      %s95 = sphi 0, %s92
      %s96 = sphi 0, %s95
      %s112 = sphi 0, %s96
      %s118 = sphi 0, %s120
      %s121 = sphi 0, %s118
      %s122 = sphi 0, %s121
      %s138 = sphi 0, %s122
      %s142 = sphi 0, %s142
      %s144 = sphi 0, %s142
      %s145 = sphi 0, %s144
      %s159 = sphi 0, %s145
      %s163 = sphi 0, %s163
      %s165 = sphi 0, %s163
      %s166 = sphi 0, %s165
      %s180 = sphi 0, %s166
      %s184 = sphi 0, %s184
      %s186 = sphi 0, %s184
      %s187 = sphi 0, %s186
      %s201 = sphi 0, %s187
      %s207 = sphi 0, %s209
      %s210 = sphi 0, %s207
      %s211 = sphi 0, %s210
      %s227 = sphi 0, %s211
    $region4: #{tpu_custom_call.1} parent=1 // loop_header_branch
      %21 = sbr.rel (%p19) target = $region8
    $region5: #{tpu_custom_call.1} parent=1 // loop_body
      %s23 = ssub.s32 %s18, 1
      %s24 = ssub.s32 %s18, 2
      %s31 = sadd.s32 1, %s26
      %p32 = scmp.ge.s32.totalorder %s31, 2
      %s33 = scalar_select %p32, 0, %s31
      %s34 = sadd.s32 1, %s25
      %s35 = scalar_select %p32, %s34, %s25
      %p36 = scmp.ge.s32.totalorder %s35, 1
      %s37 = scalar_select %p36, 0, %s35
      %s38 = ssub.s32 %s25, %s37
      %p39 = scmp.eq.s32.totalorder %s38, 0
      %s41 = sadd.s32 %s40, 1
      %s42 = scalar_select %p39, %s40, %s41
      %p45 = pneg %p39
      %p46 = scmp.eq.s32.totalorder %s18, 1
      %p47 = por %p45, %p46
      %p48 = scmp.ne.s32.totalorder %s40, %s43
      %p49 = scmp.eq.s32.totalorder %s18, 0
      %p50 = por %p48, %p49
      %p51 = scmp.ne.s32.totalorder %s40, %s43
      %p52 = scmp.eq.s32.totalorder %s23, 1
      %p53 = por %p51, %p52
      %p54 = scmp.ne.s32.totalorder %s43, %s44
      %p55 = scmp.eq.s32.totalorder %s23, 0
      %p56 = por %p54, %p55
      %p57 = scmp.ne.s32.totalorder %s43, %s44
      %p58 = scmp.eq.s32.totalorder %s24, 1
      %p59 = por %p57, %p58
      %p61 = scmp.ne.s32.totalorder %s44, %s60
      %p62 = scmp.eq.s32.totalorder %s24, 0
      %p63 = por %p61, %p62
      %s64 = ssub.s32 %s26, %s33
      %p65 = scmp.eq.s32.totalorder %s64, 0
      %s67 = sadd.s32 %s66, 1
      %s68 = scalar_select %p65, %s66, %s67
      %p71 = pneg %p65
      %p72 = scmp.eq.s32.totalorder %s18, 1
      %p73 = por %p71, %p72
      %p74 = scmp.ne.s32.totalorder %s66, %s69
      %p75 = scmp.eq.s32.totalorder %s18, 0
      %p76 = por %p74, %p75
      %p77 = scmp.ne.s32.totalorder %s66, %s69
      %p78 = scmp.eq.s32.totalorder %s23, 1
      %p79 = por %p77, %p78
      %p80 = scmp.ne.s32.totalorder %s69, %s70
      %p81 = scmp.eq.s32.totalorder %s23, 0
      %p82 = por %p80, %p81
      %p83 = scmp.ne.s32.totalorder %s69, %s70
      %p84 = scmp.eq.s32.totalorder %s24, 1
      %p85 = por %p83, %p84
      %p87 = scmp.ne.s32.totalorder %s70, %s86
      %p88 = scmp.eq.s32.totalorder %s24, 0
      %p89 = por %p87, %p88
      %s90 = ssub.s32 %s26, %s33
      %p91 = scmp.eq.s32.totalorder %s90, 0
      %s93 = sadd.s32 %s92, 1
      %s94 = scalar_select %p91, %s92, %s93
      %p97 = pneg %p91
      %p98 = scmp.eq.s32.totalorder %s18, 1
      %p99 = por %p97, %p98
      %p100 = scmp.ne.s32.totalorder %s92, %s95
      %p101 = scmp.eq.s32.totalorder %s18, 0
      %p102 = por %p100, %p101
      %p103 = scmp.ne.s32.totalorder %s92, %s95
      %p104 = scmp.eq.s32.totalorder %s23, 1
      %p105 = por %p103, %p104
      %p106 = scmp.ne.s32.totalorder %s95, %s96
      %p107 = scmp.eq.s32.totalorder %s23, 0
      %p108 = por %p106, %p107
      %p109 = scmp.ne.s32.totalorder %s95, %s96
      %p110 = scmp.eq.s32.totalorder %s24, 1
      %p111 = por %p109, %p110
      %p113 = scmp.ne.s32.totalorder %s96, %s112
      %p114 = scmp.eq.s32.totalorder %s24, 0
      %p115 = por %p113, %p114
      %s116 = ssub.s32 %s26, %s33
      %p117 = scmp.eq.s32.totalorder %s116, 0
      %s119 = sadd.s32 %s118, 1
      %s120 = scalar_select %p117, %s118, %s119
      %p123 = pneg %p117
      %p124 = scmp.eq.s32.totalorder %s18, 1
      %p125 = por %p123, %p124
      %p126 = scmp.ne.s32.totalorder %s118, %s121
      %p127 = scmp.eq.s32.totalorder %s18, 0
      %p128 = por %p126, %p127
      %p129 = scmp.ne.s32.totalorder %s118, %s121
      %p130 = scmp.eq.s32.totalorder %s23, 1
      %p131 = por %p129, %p130
      %p132 = scmp.ne.s32.totalorder %s121, %s122
      %p133 = scmp.eq.s32.totalorder %s23, 0
      %p134 = por %p132, %p133
      %p135 = scmp.ne.s32.totalorder %s121, %s122
      %p136 = scmp.eq.s32.totalorder %s24, 1
      %p137 = por %p135, %p136
      %p139 = scmp.ne.s32.totalorder %s122, %s138
      %p140 = scmp.eq.s32.totalorder %s24, 0
      %p141 = por %p139, %p140
      %s143 = sadd.s32 %s142, 1
      %p146 = scmp.eq.s32.totalorder %s18, 1
      %p147 = scmp.ne.s32.totalorder %s142, %s144
      %p148 = scmp.eq.s32.totalorder %s18, 0
      %p149 = por %p147, %p148
      %p150 = scmp.ne.s32.totalorder %s142, %s144
      %p151 = scmp.eq.s32.totalorder %s23, 1
      %p152 = por %p150, %p151
      %p153 = scmp.ne.s32.totalorder %s144, %s145
      %p154 = scmp.eq.s32.totalorder %s23, 0
      %p155 = por %p153, %p154
      %p156 = scmp.ne.s32.totalorder %s144, %s145
      %p157 = scmp.eq.s32.totalorder %s24, 1
      %p158 = por %p156, %p157
      %p160 = scmp.ne.s32.totalorder %s145, %s159
      %p161 = scmp.eq.s32.totalorder %s24, 0
      %p162 = por %p160, %p161
      %s164 = sadd.s32 %s163, 1
      %p167 = scmp.eq.s32.totalorder %s18, 1
      %p168 = scmp.ne.s32.totalorder %s163, %s165
      %p169 = scmp.eq.s32.totalorder %s18, 0
      %p170 = por %p168, %p169
      %p171 = scmp.ne.s32.totalorder %s163, %s165
      %p172 = scmp.eq.s32.totalorder %s23, 1
      %p173 = por %p171, %p172
      %p174 = scmp.ne.s32.totalorder %s165, %s166
      %p175 = scmp.eq.s32.totalorder %s23, 0
      %p176 = por %p174, %p175
      %p177 = scmp.ne.s32.totalorder %s165, %s166
      %p178 = scmp.eq.s32.totalorder %s24, 1
      %p179 = por %p177, %p178
      %p181 = scmp.ne.s32.totalorder %s166, %s180
      %p182 = scmp.eq.s32.totalorder %s24, 0
      %p183 = por %p181, %p182
      %s185 = sadd.s32 %s184, 1
      %p188 = scmp.eq.s32.totalorder %s18, 1
      %p189 = scmp.ne.s32.totalorder %s184, %s186
      %p190 = scmp.eq.s32.totalorder %s18, 0
      %p191 = por %p189, %p190
      %p192 = scmp.ne.s32.totalorder %s184, %s186
      %p193 = scmp.eq.s32.totalorder %s23, 1
      %p194 = por %p192, %p193
      %p195 = scmp.ne.s32.totalorder %s186, %s187
      %p196 = scmp.eq.s32.totalorder %s23, 0
      %p197 = por %p195, %p196
      %p198 = scmp.ne.s32.totalorder %s186, %s187
      %p199 = scmp.eq.s32.totalorder %s24, 1
      %p200 = por %p198, %p199
      %p202 = scmp.ne.s32.totalorder %s187, %s201
      %p203 = scmp.eq.s32.totalorder %s24, 0
      %p204 = por %p202, %p203
      %s205 = ssub.s32 %s25, %s37
      %p206 = scmp.eq.s32.totalorder %s205, 0
      %s208 = sadd.s32 %s207, 1
      %s209 = scalar_select %p206, %s207, %s208
      %p212 = pneg %p206
      %p213 = scmp.eq.s32.totalorder %s18, 1
      %p214 = por %p212, %p213
      %p215 = scmp.ne.s32.totalorder %s207, %s210
      %p216 = scmp.eq.s32.totalorder %s18, 0
      %p217 = por %p215, %p216
      %p218 = scmp.ne.s32.totalorder %s207, %s210
      %p219 = scmp.eq.s32.totalorder %s23, 1
      %p220 = por %p218, %p219
      %p221 = scmp.ne.s32.totalorder %s210, %s211
      %p222 = scmp.eq.s32.totalorder %s23, 0
      %p223 = por %p221, %p222
      %p224 = scmp.ne.s32.totalorder %s210, %s211
      %p225 = scmp.eq.s32.totalorder %s24, 1
      %p226 = por %p224, %p225
      %p228 = scmp.ne.s32.totalorder %s211, %s227
      %p229 = scmp.eq.s32.totalorder %s24, 0
      %p230 = por %p228, %p229
      %p231 = scmp.le.s32.totalorder 1, %s18
      %p232 = scmp.lt.s32.totalorder %s18, 3
      %p233 = pnand %p231, %p232
      %p234 = pneg %p233
      // Predicated region
      $region9: #{tpu_custom_call.1} parent=5 // pred_check
        _
      $region10: #{tpu_custom_call.1} parent=5 // pred_check_branch
        %236 = sbr.rel (%p233) target = $region12
      $region11: #{tpu_custom_call.1} parent=5 // pred_region
        %s237 = ssub.s32 %s18, 1
        // Predicated region
        $region13: #{tpu_custom_call.1} parent=11 // pred_check
          %p238 = pneg %p56
        $region14: #{tpu_custom_call.1} parent=11 // pred_check_branch
          %240 = sbr.rel (%p238) target = $region16
        $region15: #{tpu_custom_call.1} parent=11 // pred_region
          %s241 = smul.u32 2, %s27
          %s243 = ssub.s32 256, 256
          %244 = vsyncadd [#allocation4], %s243
          %s245 = smul.addr %s241, 128
          %s246 = scalar_lea.hbm %s0, %s245
          %s247 = sshll.u32 [#allocation3], 4
          %s248 = int_to_ptr.vmem [resolvable:$true] %s247
          %253 = dma.hbm_to_vmem [thread:$0]  %s246, 256, %s248, [#allocation4], 128, 128, 8
        $region16: #{tpu_custom_call.1} parent=11 // pred_fallthru
          _
        // Predicated region
        $region17: #{tpu_custom_call.1} parent=11 // pred_check
          %p254 = pneg %p155
        $region18: #{tpu_custom_call.1} parent=11 // pred_check_branch
          %256 = sbr.rel (%p254) target = $region20
        $region19: #{tpu_custom_call.1} parent=11 // pred_region
          _
        $region20: #{tpu_custom_call.1} parent=11 // pred_fallthru
          _
        // Predicated region
        $region21: #{tpu_custom_call.1} parent=11 // pred_check
          %p257 = pneg %p176
        $region22: #{tpu_custom_call.1} parent=11 // pred_check_branch
          %259 = sbr.rel (%p257) target = $region24
        $region23: #{tpu_custom_call.1} parent=11 // pred_region
          _
        $region24: #{tpu_custom_call.1} parent=11 // pred_fallthru
          _
        // Predicated region
        $region25: #{tpu_custom_call.1} parent=11 // pred_check
          %p260 = pneg %p197
        $region26: #{tpu_custom_call.1} parent=11 // pred_check_branch
          %262 = sbr.rel (%p260) target = $region28
        $region27: #{tpu_custom_call.1} parent=11 // pred_region
          _
        $region28: #{tpu_custom_call.1} parent=11 // pred_fallthru
          _
      $region12: #{tpu_custom_call.1} parent=5 // pred_fallthru
        _
      %p263 = scmp.lt.s32.totalorder %s18, 2
      // Predicated region
      $region29: #{tpu_custom_call.1} parent=5 // pred_check
        %p264 = pneg %p263
      $region30: #{tpu_custom_call.1} parent=5 // pred_check_branch
        %266 = sbr.rel (%p264) target = $region32
      $region31: #{tpu_custom_call.1} parent=5 // pred_region
        // Predicated region
        $region33: #{tpu_custom_call.1} parent=31 // pred_check
          %p267 = pneg %p76
        $region34: #{tpu_custom_call.1} parent=31 // pred_check_branch
          %269 = sbr.rel (%p267) target = $region36
        $region35: #{tpu_custom_call.1} parent=31 // pred_region
          %s270 = sand.u32 %s18, 1
          %s271 = scalar_lea.sflag [#allocation7], %s270
          %s272 = sand.u32 %s66, 1
          %s273 = smul.addr %s272, 128
          %s274 = scalar_lea.vmem [#allocation6], %s273
          %s276 = ssub.s32 2048, 2048
          %277 = vsyncadd %s271, %s276
          %s278 = smul.addr %s26, 128
          %s279 = scalar_lea.hbm %s1, %s278
          %s280 = sshll.u32 %s274, 4
          %s281 = int_to_ptr.vmem [resolvable:$true] %s280
          %286 = dma.hbm_to_vmem [thread:$0]  %s279, 2048, %s281, %s271, 256, 128, 8
        $region36: #{tpu_custom_call.1} parent=31 // pred_fallthru
          _
        // Predicated region
        $region37: #{tpu_custom_call.1} parent=31 // pred_check
          %p287 = pneg %p102
        $region38: #{tpu_custom_call.1} parent=31 // pred_check_branch
          %289 = sbr.rel (%p287) target = $region40
        $region39: #{tpu_custom_call.1} parent=31 // pred_region
          %p290 = scmp.lt.s32.totalorder %s26, 1
          %s291 = scalar_select %p290, %s26, 1
          %s292 = scalar_lea.vmem %s2, %s291
        $region40: #{tpu_custom_call.1} parent=31 // pred_fallthru
          _
        // Predicated region
        $region41: #{tpu_custom_call.1} parent=31 // pred_check
          %p293 = pneg %p128
        $region42: #{tpu_custom_call.1} parent=31 // pred_check_branch
          %295 = sbr.rel (%p293) target = $region44
        $region43: #{tpu_custom_call.1} parent=31 // pred_region
          %s296 = sand.u32 %s18, 1
          %s297 = scalar_lea.sflag [#allocation7], %s296
          %s298 = sand.u32 %s118, 1
          %s299 = smul.addr %s298, 128
          %s300 = scalar_lea.vmem [#allocation8], %s299
          %s301 = smul.u32 16, %s26
          %s303 = ssub.s32 2048, 2048
          %304 = vsyncadd %s297, %s303
          %s305 = smul.addr %s301, 128
          %s306 = scalar_lea.hbm %s3, %s305
          %s307 = sshll.u32 %s300, 4
          %s308 = int_to_ptr.vmem [resolvable:$true] %s307
          %313 = dma.hbm_to_vmem [thread:$0]  %s306, 2048, %s308, %s297, 128, 128, 8
        $region44: #{tpu_custom_call.1} parent=31 // pred_fallthru
          _
      $region32: #{tpu_custom_call.1} parent=5 // pred_fallthru
        _
      %p314 = scmp.le.s32.totalorder 1, %s18
      %p315 = scmp.lt.s32.totalorder %s18, 3
      %p316 = pnand %p314, %p315
      %p317 = pneg %p316
      // Predicated region
      $region45: #{tpu_custom_call.1} parent=5 // pred_check
        _
      $region46: #{tpu_custom_call.1} parent=5 // pred_check_branch
        %319 = sbr.rel (%p316) target = $region48
      $region47: #{tpu_custom_call.1} parent=5 // pred_region
        %s320 = ssub.s32 %s18, 1
        // Predicated region
        $region49: #{tpu_custom_call.1} parent=47 // pred_check
          %p321 = pneg %p56
        $region50: #{tpu_custom_call.1} parent=47 // pred_check_branch
          %323 = sbr.rel (%p321) target = $region52
        $region51: #{tpu_custom_call.1} parent=47 // pred_region
          %324 = dma.done [#allocation4], 256
        $region52: #{tpu_custom_call.1} parent=47 // pred_fallthru
          _
        %s325 = sand.u32 %s23, 1
        %s326 = scalar_lea.sflag [#allocation7], %s325
        %s327 = sand.u32 %s69, 1
        %s328 = smul.addr %s327, 128
        %s329 = scalar_lea.vmem [#allocation6], %s328
        // Predicated region
        $region53: #{tpu_custom_call.1} parent=47 // pred_check
          %p330 = pneg %p82
        $region54: #{tpu_custom_call.1} parent=47 // pred_check_branch
          %332 = sbr.rel (%p330) target = $region56
        $region55: #{tpu_custom_call.1} parent=47 // pred_region
          %333 = dma.done %s326, 2048
        $region56: #{tpu_custom_call.1} parent=47 // pred_fallthru
          _
        %s334 = sand.u32 %s23, 1
        %s335 = scalar_lea.sflag [#allocation7], %s334
        %s336 = sand.u32 %s121, 1
        %s337 = smul.addr %s336, 128
        %s338 = scalar_lea.vmem [#allocation8], %s337
        // Predicated region
        $region57: #{tpu_custom_call.1} parent=47 // pred_check
          %p339 = pneg %p134
        $region58: #{tpu_custom_call.1} parent=47 // pred_check_branch
          %341 = sbr.rel (%p339) target = $region60
        $region59: #{tpu_custom_call.1} parent=47 // pred_region
          %342 = dma.done %s335, 2048
        $region60: #{tpu_custom_call.1} parent=47 // pred_fallthru
          _
        %p343 = pneg %p56
        %p344 = pneg %p53
        %s345 = sand.u32 %s23, 1
        %s346 = scalar_lea.sflag [#allocation7], %s345
        %s347 = sand.u32 %s69, 1
        %s348 = smul.addr %s347, 128
        %s349 = scalar_lea.vmem [#allocation6], %s348
        %p350 = pneg %p82
        %p351 = pneg %p79
        %p352 = scmp.lt.s32.totalorder %s28, 1
        %s353 = scalar_select %p352, %s28, 1
        %s354 = scalar_lea.vmem %s2, %s353
        %p355 = pneg %p108
        %p356 = pneg %p105
        %s357 = sand.u32 %s23, 1
        %s358 = scalar_lea.sflag [#allocation7], %s357
        %s359 = sand.u32 %s121, 1
        %s360 = smul.addr %s359, 128
        %s361 = scalar_lea.vmem [#allocation8], %s360
        %p362 = pneg %p134
        %p363 = pneg %p131
        %p364 = pneg %p155
        %p365 = pneg %p152
        %p366 = pneg %p176
        %p367 = pneg %p173
        %p368 = pneg %p197
        %p369 = pneg %p194
        %p370 = pneg %p223
        %p371 = pneg %p220
        %s372 = smul.u32 2, %s27
        %p373 = scmp.lt.s32.totalorder %s28, 1
        %s374 = scalar_select %p373, %s28, 1
        %s375 = scalar_lea.vmem %s2, %s374
        %s376 = smul.u32 16, %s28
        %s377 = smul.u32 2, %s27
        %p378 = scmp.eq.s32.totalorder %s28, 0
        // Predicated region
        $region61: #{tpu_custom_call.1} parent=47 // pred_check
          %p379 = pneg %p378
        $region62: #{tpu_custom_call.1} parent=47 // pred_check_branch
          %381 = sbr.rel (%p379) target = $region64
        $region63: #{tpu_custom_call.1} parent=47 // pred_region
          %382 = vst [vmem:[#allocation2] sm:$0xff] 0.0
          %383 = vst [vmem:[#allocation2 + $0x8] sm:$0xff] 0.0
        $region64: #{tpu_custom_call.1} parent=47 // pred_fallthru
          _
        %v384 = vld [vmem:[#allocation3] sm:$0xff]
        %v385 = vld [vmem:[#allocation3 + $0x8] sm:$0xff]
        %v386 = vld [vmem:[%s329] sm:$0xff]
        %v387 = vld [vmem:[%s329 + $0x8] sm:$0xff]
        %v388 = vld [vmem:[%s329 + $0x10] sm:$0xff]
        %v389 = vld [vmem:[%s329 + $0x18] sm:$0xff]
        %v390 = vld [vmem:[%s329 + $0x20] sm:$0xff]
        %v391 = vld [vmem:[%s329 + $0x28] sm:$0xff]
        %v392 = vld [vmem:[%s329 + $0x30] sm:$0xff]
        %v393 = vld [vmem:[%s329 + $0x38] sm:$0xff]
        %v394 = vld [vmem:[%s329 + $0x40] sm:$0xff]
        %v395 = vld [vmem:[%s329 + $0x48] sm:$0xff]
        %v396 = vld [vmem:[%s329 + $0x50] sm:$0xff]
        %v397 = vld [vmem:[%s329 + $0x58] sm:$0xff]
        %v398 = vld [vmem:[%s329 + $0x60] sm:$0xff]
        %v399 = vld [vmem:[%s329 + $0x68] sm:$0xff]
        %v400 = vld [vmem:[%s329 + $0x70] sm:$0xff]
        %v401 = vld [vmem:[%s329 + $0x78] sm:$0xff]
        %v402 = vld [vmem:[%s375] sm:$0x1]
        %v403 = vld [vmem:[%s338] sm:$0xff]
        %v404 = vld [vmem:[%s338 + $0x8] sm:$0xff]
        %v405 = vld [vmem:[%s338 + $0x10] sm:$0xff]
        %v406 = vld [vmem:[%s338 + $0x18] sm:$0xff]
        %v407 = vld [vmem:[%s338 + $0x20] sm:$0xff]
        %v408 = vld [vmem:[%s338 + $0x28] sm:$0xff]
        %v409 = vld [vmem:[%s338 + $0x30] sm:$0xff]
        %v410 = vld [vmem:[%s338 + $0x38] sm:$0xff]
        %v411 = vld [vmem:[%s338 + $0x40] sm:$0xff]
        %v412 = vld [vmem:[%s338 + $0x48] sm:$0xff]
        %v413 = vld [vmem:[%s338 + $0x50] sm:$0xff]
        %v414 = vld [vmem:[%s338 + $0x58] sm:$0xff]
        %v415 = vld [vmem:[%s338 + $0x60] sm:$0xff]
        %v416 = vld [vmem:[%s338 + $0x68] sm:$0xff]
        %v417 = vld [vmem:[%s338 + $0x70] sm:$0xff]
        %v418 = vld [vmem:[%s338 + $0x78] sm:$0xff]
        %v420 = vlaneseq
        %v421 = vshrl.u32 %v420, 7
        %v422 = vsub.s32 0, %v421
        %v423 = vrot.slane %v402, %v422
        %425 = vmatprep.subr.mxu0 0.0
        %426 = vmatpush1.msra.mxu0 %v386
        %427 = vmatprep.subr.mxu0 0.0
        %428 = vmatpush1.msra.mxu0 %v387
        %429 = vmatprep.subr.mxu0 0.0
        %430 = vmatpush1.msra.mxu0 %v388
        %431 = vmatprep.subr.mxu0 0.0
        %432 = vmatpush1.msra.mxu0 %v389
        %433 = vmatprep.subr.mxu0 0.0
        %434 = vmatpush1.msra.mxu0 %v390
        %435 = vmatprep.subr.mxu0 0.0
        %436 = vmatpush1.msra.mxu0 %v391
        %437 = vmatprep.subr.mxu0 0.0
        %438 = vmatpush1.msra.mxu0 %v392
        %439 = vmatprep.subr.mxu0 0.0
        %440 = vmatpush1.msra.mxu0 %v393
        %441 = vmatprep.subr.mxu0 0.0
        %442 = vmatpush1.msra.mxu0 %v394
        %443 = vmatprep.subr.mxu0 0.0
        %444 = vmatpush1.msra.mxu0 %v395
        %445 = vmatprep.subr.mxu0 0.0
        %446 = vmatpush1.msra.mxu0 %v396
        %447 = vmatprep.subr.mxu0 0.0
        %448 = vmatpush1.msra.mxu0 %v397
        %449 = vmatprep.subr.mxu0 0.0
        %450 = vmatpush1.msra.mxu0 %v398
        %451 = vmatprep.subr.mxu0 0.0
        %452 = vmatpush1.msra.mxu0 %v399
        %453 = vmatprep.subr.mxu0 0.0
        %454 = vmatpush1.msra.mxu0 %v400
        %455 = vmatprep.subr.mxu0 0.0
        %456 = vmatpush1.msra.mxu0 %v401
        %457 = vmatprep.subr.mxu0 0.0
        %458 = vmatpush1.msra.mxu0 0.0
        %459 = vmatprep.subr.mxu0 0.0
        %460 = vmatpush1.msra.mxu0 0.0
        %461 = vmatprep.subr.mxu0 0.0
        %462 = vmatpush1.msra.mxu0 0.0
        %463 = vmatprep.subr.mxu0 0.0
        %464 = vmatpush1.msra.mxu0 0.0
        %465 = vmatprep.subr.mxu0 0.0
        %466 = vmatpush1.msra.mxu0 0.0
        %467 = vmatprep.subr.mxu0 0.0
        %468 = vmatpush1.msra.mxu0 0.0
        %469 = vmatprep.subr.mxu0 0.0
        %470 = vmatpush1.msra.mxu0 0.0
        %471 = vmatprep.subr.mxu0 0.0
        %472 = vmatpush1.msra.mxu0 0.0
        %473 = vmatprep.subr.mxu0 0.0
        %474 = vmatpush1.msra.mxu0 0.0
        %475 = vmatprep.subr.mxu0 0.0
        %476 = vmatpush1.msra.mxu0 0.0
        %477 = vmatprep.subr.mxu0 0.0
        %478 = vmatpush1.msra.mxu0 0.0
        %479 = vmatprep.subr.mxu0 0.0
        %480 = vmatpush1.msra.mxu0 0.0
        %481 = vmatprep.subr.mxu0 0.0
        %482 = vmatpush1.msra.mxu0 0.0
        %483 = vmatprep.subr.mxu0 0.0
        %484 = vmatpush1.msra.mxu0 0.0
        %485 = vmatprep.subr.mxu0 0.0
        %486 = vmatpush1.msra.mxu0 0.0
        %487 = vmatprep.subr.mxu0 0.0
        %488 = vmatpush1.msra.mxu0 0.0
        %489 = vmatprep.mubr.f32.mxu0 0.0
        %490 = vmatmul.mubr.f32.gmra.mrb[0].mxu0 %v384
        %v491 = vpop.f32.mrb[0].mxu0
        %v492 = vadd.f32 %v423, %v491
        %v493 = vpop.f32.mrb[0].mxu0
        %494 = vmatprep.mubr.f32.mxu0 0.0
        %495 = vmatmul.mubr.f32.gmra.mrb[0].mxu0 %v385
        %v496 = vpop.f32.mrb[0].mxu0
        %v497 = vadd.f32 %v423, %v496
        %v498 = vpop.f32.mrb[0].mxu0
        %499 = vdwg.mxu0
        %v500 = vmax.f32 %v492, 0.0
        %v501 = vmax.f32 %v497, 0.0
        %v502 = vld [vmem:[#allocation2] sm:$0xff]
        %v503 = vld [vmem:[#allocation2 + $0x8] sm:$0xff]
        %504 = vmatprep.subr.mxu0 0.0
        %505 = vmatpush1.msra.mxu0 %v403
        %506 = vmatprep.subr.mxu0 0.0
        %507 = vmatpush1.msra.mxu0 %v404
        %508 = vmatprep.subr.mxu0 0.0
        %509 = vmatpush1.msra.mxu0 %v405
        %510 = vmatprep.subr.mxu0 0.0
        %511 = vmatpush1.msra.mxu0 %v406
        %512 = vmatprep.subr.mxu0 0.0
        %513 = vmatpush1.msra.mxu0 %v407
        %514 = vmatprep.subr.mxu0 0.0
        %515 = vmatpush1.msra.mxu0 %v408
        %516 = vmatprep.subr.mxu0 0.0
        %517 = vmatpush1.msra.mxu0 %v409
        %518 = vmatprep.subr.mxu0 0.0
        %519 = vmatpush1.msra.mxu0 %v410
        %520 = vmatprep.subr.mxu0 0.0
        %521 = vmatpush1.msra.mxu0 %v411
        %522 = vmatprep.subr.mxu0 0.0
        %523 = vmatpush1.msra.mxu0 %v412
        %524 = vmatprep.subr.mxu0 0.0
        %525 = vmatpush1.msra.mxu0 %v413
        %526 = vmatprep.subr.mxu0 0.0
        %527 = vmatpush1.msra.mxu0 %v414
        %528 = vmatprep.subr.mxu0 0.0
        %529 = vmatpush1.msra.mxu0 %v415
        %530 = vmatprep.subr.mxu0 0.0
        %531 = vmatpush1.msra.mxu0 %v416
        %532 = vmatprep.subr.mxu0 0.0
        %533 = vmatpush1.msra.mxu0 %v417
        %534 = vmatprep.subr.mxu0 0.0
        %535 = vmatpush1.msra.mxu0 %v418
        %536 = vmatprep.subr.mxu0 0.0
        %537 = vmatpush1.msra.mxu0 0.0
        %538 = vmatprep.subr.mxu0 0.0
        %539 = vmatpush1.msra.mxu0 0.0
        %540 = vmatprep.subr.mxu0 0.0
        %541 = vmatpush1.msra.mxu0 0.0
        %542 = vmatprep.subr.mxu0 0.0
        %543 = vmatpush1.msra.mxu0 0.0
        %544 = vmatprep.subr.mxu0 0.0
        %545 = vmatpush1.msra.mxu0 0.0
        %546 = vmatprep.subr.mxu0 0.0
        %547 = vmatpush1.msra.mxu0 0.0
        %548 = vmatprep.subr.mxu0 0.0
        %549 = vmatpush1.msra.mxu0 0.0
        %550 = vmatprep.subr.mxu0 0.0
        %551 = vmatpush1.msra.mxu0 0.0
        %552 = vmatprep.subr.mxu0 0.0
        %553 = vmatpush1.msra.mxu0 0.0
        %554 = vmatprep.subr.mxu0 0.0
        %555 = vmatpush1.msra.mxu0 0.0
        %556 = vmatprep.subr.mxu0 0.0
        %557 = vmatpush1.msra.mxu0 0.0
        %558 = vmatprep.subr.mxu0 0.0
        %559 = vmatpush1.msra.mxu0 0.0
        %560 = vmatprep.subr.mxu0 0.0
        %561 = vmatpush1.msra.mxu0 0.0
        %562 = vmatprep.subr.mxu0 0.0
        %563 = vmatpush1.msra.mxu0 0.0
        %564 = vmatprep.subr.mxu0 0.0
        %565 = vmatpush1.msra.mxu0 0.0
        %566 = vmatprep.subr.mxu0 0.0
        %567 = vmatpush1.msra.mxu0 0.0
        %568 = vmatprep.mubr.f32.mxu0 0.0
        %569 = vmatmul.mubr.f32.gmra.mrb[0].mxu0 %v500
        %v570 = vpop.f32.mrb[0].mxu0
        %v571 = vadd.f32 0.0, %v570
        %v572 = vpop.f32.mrb[0].mxu0
        %573 = vmatprep.mubr.f32.mxu0 0.0
        %574 = vmatmul.mubr.f32.gmra.mrb[0].mxu0 %v501
        %v575 = vpop.f32.mrb[0].mxu0
        %v576 = vadd.f32 0.0, %v575
        %v577 = vpop.f32.mrb[0].mxu0
        %578 = vdwg.mxu0
        %v579 = vadd.f32 %v502, %v571
        %v580 = vadd.f32 %v503, %v576
        %581 = vst [vmem:[#allocation2] sm:$0xff] %v579
        %582 = vst [vmem:[#allocation2 + $0x8] sm:$0xff] %v580
        %p583 = scmp.eq.s32.totalorder %s28, 1
        // Predicated region
        $region65: #{tpu_custom_call.1} parent=47 // pred_check
          %p584 = pneg %p583
        $region66: #{tpu_custom_call.1} parent=47 // pred_check_branch
          %586 = sbr.rel (%p584) target = $region68
        $region67: #{tpu_custom_call.1} parent=47 // pred_region
          %v587 = vld [vmem:[#allocation2] sm:$0xff]
          %v588 = vld [vmem:[#allocation2 + $0x8] sm:$0xff]
          %v589 = vadd.f32 %v384, %v587
          %v590 = vadd.f32 %v385, %v588
          %v591 = vld [vmem:[%s4] sm:$0x1]
          %v593 = vlaneseq
          %v594 = vshrl.u32 %v593, 7
          %v595 = vsub.s32 0, %v594
          %v596 = vrot.slane %v591, %v595
          %v598 = vadd.f32 %v589, %v596
          %v599 = vadd.f32 %v590, %v596
          %600 = vadd.xlane.f32.xlu0 %v598
          %v601 = vpop.xlane.xlu0 %600
          %602 = vadd.xlane.f32.xlu0 %v599
          %v603 = vpop.xlane.xlu0 %602
          %v604 = vrcp.pop 128.0
          %v605 = vmul.f32 %v601, %v604
          %v606 = vmul.f32 %v603, %v604
          %v607 = vsub.f32 %v598, %v605
          %v608 = vsub.f32 %v599, %v606
          %v609 = vmul.f32 %v607, %v607
          %v610 = vmul.f32 %v608, %v608
          %611 = vadd.xlane.f32.xlu0 %v609
          %v612 = vpop.xlane.xlu0 %611
          %613 = vadd.xlane.f32.xlu0 %v610
          %v614 = vpop.xlane.xlu0 %613
          %v615 = vmul.f32 %v612, %v604
          %v616 = vmul.f32 %v614, %v604
          %v617 = vadd.f32 %v615, 1e-05
          %v618 = vadd.f32 %v616, 1e-05
          %v619 = vrsqrt.pop %v617
          %v620 = vrsqrt.pop %v618
          %v621 = vmul.f32 %v607, %v619
          %v622 = vmul.f32 %v608, %v620
          %v623 = vld [vmem:[%s5] sm:$0x1]
          %v625 = vlaneseq
          %v626 = vshrl.u32 %v625, 7
          %v627 = vsub.s32 0, %v626
          %v628 = vrot.slane %v623, %v627
          %v630 = vmul.f32 %v621, %v628
          %v631 = vmul.f32 %v622, %v628
          %v632 = vld [vmem:[%s6] sm:$0x1]
          %v634 = vlaneseq
          %v635 = vshrl.u32 %v634, 7
          %v636 = vsub.s32 0, %v635
          %v637 = vrot.slane %v632, %v636
          %v639 = vadd.f32 %v630, %v637
          %v640 = vadd.f32 %v631, %v637
          %641 = vst [vmem:[#allocation9] sm:$0xff] %v639
          %642 = vst [vmem:[#allocation9 + $0x8] sm:$0xff] %v640
        $region68: #{tpu_custom_call.1} parent=47 // pred_fallthru
          _
        // Predicated region
        $region69: #{tpu_custom_call.1} parent=47 // pred_check
          %p643 = pneg %p220
        $region70: #{tpu_custom_call.1} parent=47 // pred_check_branch
          %645 = sbr.rel (%p643) target = $region72
        $region71: #{tpu_custom_call.1} parent=47 // pred_region
          %s646 = smul.u32 2, %s27
          %s648 = ssub.s32 256, 256
          %649 = vsyncadd [#allocation5], %s648
          %s650 = smul.addr %s646, 128
          %s651 = scalar_lea.hbm %s7, %s650
          %s652 = sshll.u32 [#allocation9], 4
          %s653 = int_to_ptr.vmem [resolvable:$true] %s652
          %658 = dma.vmem_to_hbm [thread:$0]  %s653, 256, %s651, [#allocation5], 128, 128, 8
        $region72: #{tpu_custom_call.1} parent=47 // pred_fallthru
          _
        // Predicated region
        $region73: #{tpu_custom_call.1} parent=47 // pred_check
          %p659 = pneg %p220
        $region74: #{tpu_custom_call.1} parent=47 // pred_check_branch
          %661 = sbr.rel (%p659) target = $region76
        $region75: #{tpu_custom_call.1} parent=47 // pred_region
          %662 = dma.done [#allocation5], 256
        $region76: #{tpu_custom_call.1} parent=47 // pred_fallthru
          _
      $region48: #{tpu_custom_call.1} parent=5 // pred_fallthru
        _
      %p663 = scmp.le.s32.totalorder 2, %s18
      // Predicated region
      $region77: #{tpu_custom_call.1} parent=5 // pred_check
        %p664 = pneg %p663
      $region78: #{tpu_custom_call.1} parent=5 // pred_check_branch
        %666 = sbr.rel (%p664) target = $region80
      $region79: #{tpu_custom_call.1} parent=5 // pred_region
        %s667 = ssub.s32 %s18, 2
      $region80: #{tpu_custom_call.1} parent=5 // pred_fallthru
        _
    $region6: #{tpu_custom_call.1} parent=1 // loop_footer
      %s22 = sadd.s32 1, %s18
    $region7: #{tpu_custom_call.1} parent=1 // loop_footer_branch
      %17 = sbr.rel target = $region3
    $region8: #{tpu_custom_call.1} parent=1 // loop_exit
      _
    %668 = vsyncpa [#allocation4], 1
    %s669 = scalar_lea.sflag [#allocation4], 1
    %670 = vsyncpa %s669, 1
    %671 = vsyncpa [#allocation7], 1
    %s672 = scalar_lea.sflag [#allocation7], 1
    %673 = vsyncpa %s672, 1
    %674 = vsyncpa [#allocation5], 1
    %s675 = scalar_lea.sflag [#allocation5], 1
    %676 = vsyncpa %s675, 1

</llo_original>
